<compile_context>
chip_gen: v7x
topology: tpu7x:2x2x1
jax: 0.10.0
libtpu: 0.0.40
codegen_flags: <defaults>
</compile_context>

<pallas_src>
import functools
import random as _pyrandom

import jax
import jax.numpy as jnp
from jax.experimental import pallas as pl
from jax.experimental.pallas import tpu as pltpu


# ---------------------------------------------------------------------------
# Pass 1: per-(n, c) mean / std of x over the spatial (lane) axis.
# ---------------------------------------------------------------------------
def _stats_kernel(x_ref, mean_ref, std_ref, sum_sc, sq_sc, *,
                  eps, hw, hw_tile, n_hw_tiles):
    """x_ref: (1, TC, HW_T); mean_ref/std_ref: (1, TC, 1) f32 outputs."""
    x = x_ref[...].astype(jnp.float32)
    inv_hw = 1.0 / float(hw)
    inv_hwm1 = 1.0 / float(max(hw - 1, 1))     # unbiased (ddof=1), as torch.var

    if n_hw_tiles == 1:
        # Whole spatial extent in one tile: centered variance (best numerics).
        mean = jnp.sum(x, axis=-1, keepdims=True) * inv_hw
        xc = x - mean
        var = jnp.sum(xc * xc, axis=-1, keepdims=True) * inv_hwm1
        mean_ref[...] = mean
        std_ref[...] = jnp.sqrt(var + eps)
    else:
        h = pl.program_id(2)
        if hw % hw_tile != 0:
            # Last spatial block is partial: mask lanes past the true extent.
            lane = jax.lax.broadcasted_iota(jnp.int32, x.shape, dimension=2)
            x = jnp.where(h * hw_tile + lane < hw, x, 0.0)

        @pl.when(h == 0)
        def _():
            sum_sc[...] = jnp.zeros_like(sum_sc)
            sq_sc[...] = jnp.zeros_like(sq_sc)

        sum_sc[...] += jnp.sum(x, axis=-1, keepdims=True)
        sq_sc[...] += jnp.sum(x * x, axis=-1, keepdims=True)

        @pl.when(h == n_hw_tiles - 1)
        def _():
            mean = sum_sc[...] * inv_hw
            var = (sq_sc[...] - float(hw) * mean * mean) * inv_hwm1
            var = jnp.maximum(var, 0.0)
            mean_ref[...] = mean
            std_ref[...] = jnp.sqrt(var + eps)


# ---------------------------------------------------------------------------
# Pass 2: elementwise AdaIN:  (x - c_mean) / (c_std + eps) * s_std + s_mean.
# ---------------------------------------------------------------------------
def _apply_kernel(perm_ref, x_ref, cmean_ref, cstd_ref, smean_ref, sstd_ref,
                  out_ref, *, eps):
    del perm_ref  # only consumed by the style index_maps
    x = x_ref[...].astype(jnp.float32)
    c_std = cstd_ref[...] + eps                # content_std = sqrt(var+eps) + eps
    scale = sstd_ref[...] * pl.reciprocal(c_std, approx=False)
    out_ref[...] = ((x - cmean_ref[...]) * scale + smean_ref[...]).astype(out_ref.dtype)


# ---------------------------------------------------------------------------
# Host-side tiling / budgeting helpers.
# ---------------------------------------------------------------------------
def _cdiv(a, b):
    return -(-a // b)


def _generation_budget():
    """(per-operand tile target bytes, vmem_limit_bytes) for this TPU."""
    try:
        phys = int(pltpu.get_tpu_info().vmem_capacity_bytes)
    except Exception:  # unknown chip / query unavailable -> conservative budget
        phys = 64 * 1024 * 1024
    if phys >= 96 * 1024 * 1024:               # v5e / v6e: 128 MiB physical VMEM
        return 5 * 1024 * 1024, 96 * 1024 * 1024
    return 3 * 1024 * 1024, 52 * 1024 * 1024   # v7x: 64 MiB physical VMEM


def _choose_tiles(N, C, HW, itemsize, target_bytes):
    """Pick (channel_tile, spatial_tile) honoring TPU block-shape rules."""
    pack = {4: 8, 2: 16, 1: 32}.get(itemsize, 8)   # sublane packing per dtype
    row_bytes = max(HW * itemsize, 1)
    tc = target_bytes // row_bytes
    if tc >= C:
        tc, hw_t = C, HW                           # whole (C, HW) slab per batch
    elif tc >= pack:
        tc, hw_t = (tc // pack) * pack, HW         # channel tiling only
    else:
        # A single channel row exceeds the target: tile the spatial (lane) axis.
        tc = C if C < pack else pack
        hw_t = max(128, (target_bytes // (tc * itemsize) // 128) * 128)
        hw_t = min(hw_t, HW)
    # v7x megacore: ensure >= 2 grid blocks so both TensorCores get work.
    if N * _cdiv(C, tc) * _cdiv(HW, hw_t) < 2 and C > pack:
        tc = min(C, _cdiv(_cdiv(C, 2), pack) * pack)
    return int(tc), int(hw_t)


def adaptive_instance_normalization_pallas(x, perm, eps=1e-5, *,
                                            c_tile=None, hw_tile=None):
    """AdaIN(x, x[perm]) for NCHW `x`; `perm` is an int (N,) batch permutation."""
    N, C, H, W = x.shape
    HW = H * W
    x_flat = x.reshape(N, C, HW)                   # free (bitcast) reshape
    perm = jnp.asarray(perm, jnp.int32)

    target_tile_bytes, vmem_limit = _generation_budget()
    TC, HW_T = _choose_tiles(N, C, HW, x.dtype.itemsize, target_tile_bytes)
    if c_tile is not None:
        TC = int(c_tile)
    if hw_tile is not None:
        HW_T = int(hw_tile)
    n_c, n_hw = _cdiv(C, TC), _cdiv(HW, HW_T)

    # ---- pass 1: per-(n, c) statistics (tiny outputs, one read of x) -------
    stats_kernel = functools.partial(
        _stats_kernel, eps=float(eps), hw=HW, hw_tile=HW_T, n_hw_tiles=n_hw)
    mean, std = pl.pallas_call(
        stats_kernel,
        out_shape=(jax.ShapeDtypeStruct((N, C, 1), jnp.float32),
                   jax.ShapeDtypeStruct((N, C, 1), jnp.float32)),
        grid_spec=pltpu.PrefetchScalarGridSpec(
            num_scalar_prefetch=0,
            grid=(N, n_c, n_hw),
            in_specs=[pl.BlockSpec((1, TC, HW_T), lambda n, c, h: (n, c, h))],
            out_specs=[pl.BlockSpec((1, TC, 1), lambda n, c, h: (n, c, 0)),
                       pl.BlockSpec((1, TC, 1), lambda n, c, h: (n, c, 0))],
            scratch_shapes=[pltpu.VMEM((1, TC, 1), jnp.float32),
                            pltpu.VMEM((1, TC, 1), jnp.float32)]),
        compiler_params=pltpu.CompilerParams(
            dimension_semantics=("parallel", "parallel", "arbitrary"),
            vmem_limit_bytes=vmem_limit),
    )(x_flat)

    # ---- pass 2: elementwise apply with perm-gathered style stats ----------
    apply_kernel = functools.partial(_apply_kernel, eps=float(eps))
    out_flat = pl.pallas_call(
        apply_kernel,
        out_shape=jax.ShapeDtypeStruct((N, C, HW), x.dtype),
        grid_spec=pltpu.PrefetchScalarGridSpec(
            num_scalar_prefetch=1,         # perm lives in SMEM for the index_maps
            grid=(N, n_c, n_hw),
            in_specs=[
                pl.BlockSpec((1, TC, HW_T), lambda n, c, h, p: (n, c, h)),
                pl.BlockSpec((1, TC, 1), lambda n, c, h, p: (n, c, 0)),     # content mean
                pl.BlockSpec((1, TC, 1), lambda n, c, h, p: (n, c, 0)),     # content std
                pl.BlockSpec((1, TC, 1), lambda n, c, h, p: (p[n], c, 0)),  # style mean
                pl.BlockSpec((1, TC, 1), lambda n, c, h, p: (p[n], c, 0)),  # style std
            ],
            out_specs=pl.BlockSpec((1, TC, HW_T), lambda n, c, h, p: (n, c, h)),
        ),
        compiler_params=pltpu.CompilerParams(
            dimension_semantics=("parallel", "parallel", "parallel"),
            vmem_limit_bytes=vmem_limit),
    )(perm, x_flat, mean, std, mean, std)

    return out_flat.reshape(N, C, H, W)


class PermuteAdaptiveInstanceNorm2d:
    """JAX/Pallas port of the PyTorch module (forward semantics)."""

    def __init__(self, p=0.01, eps=1e-5):
        self.p = p
        self.eps = eps
        self.training = True

    def forward(self, x, *, rng_key):
        # Host-side Bernoulli gate with Python RNG (mirrors `random.random()`
        # in the PyTorch module) -- avoids forcing a device->host sync.
        permute = _pyrandom.random() < self.p
        if not (permute and self.training):
            return x
        N, C, H, W = x.shape
        if (H, W) == (1, 1):
            print("encountered bad dims")
            return x
        perm_indices = jax.random.permutation(rng_key, N)
        return adaptive_instance_normalization_pallas(x, perm_indices, self.eps)


# ---------------------------------------------------------------------------
# Plain-JAX reference + self-checks.
# ---------------------------------------------------------------------------
def _reference_adain(x, perm, eps=1e-5):
    N, C, H, W = x.shape
    style = x[perm]

    def mean_std(f):
        f2 = f.reshape(N, C, -1)
        m = f2.mean(axis=2).reshape(N, C, 1, 1)
        v = f2.var(axis=2, ddof=1).reshape(N, C, 1, 1)
        return m, jnp.sqrt(v + eps)

    s_mean, s_std = mean_std(style)
    c_mean, c_std = mean_std(x)
    c_std = c_std + eps
    return (x - c_mean) / c_std * s_std + s_mean


def _check(out, ref, name):
    assert jnp.allclose(out, ref, atol=2e-5, rtol=2e-5), f"mismatch vs reference: {name}"


if __name__ == "__main__":
    key = jax.random.PRNGKey(0)
    ks = jax.random.split(key, 10)

    # --- main case (lane-dense HW, full-C tile) ----------------------------
    N, C, H, W = 2, 4, 16, 16
    x = jax.random.normal(ks[0], (N, C, H, W), dtype=jnp.float32)
    perm = jax.random.permutation(ks[1], N)
    out = jax.block_until_ready(adaptive_instance_normalization_pallas(x, perm))
    _check(out, _reference_adain(x, perm), "main")

    # module path (p=1.0 forces the permuted branch deterministically)
    module = PermuteAdaptiveInstanceNorm2d(p=1.0, eps=1e-5)
    out_mod = jax.block_until_ready(module.forward(x, rng_key=ks[1]))
    _check(out_mod, _reference_adain(x, perm), "module")

    # --- non-128 spatial size: full-extent lane dim, no host pad/slice -----
    x2 = jax.random.normal(ks[2], (2, 3, 5, 7), dtype=jnp.float32)
    perm2 = jax.random.permutation(ks[3], 2)
    out2 = jax.block_until_ready(adaptive_instance_normalization_pallas(x2, perm2))
    _check(out2, _reference_adain(x2, perm2), "hw-ragged")

    # --- partial channel blocks (C=12, forced channel tile 8) --------------
    x3 = jax.random.normal(ks[4], (2, 12, 8, 16), dtype=jnp.float32)
    perm3 = jax.random.permutation(ks[5], 2)
    out3 = jax.block_until_ready(
        adaptive_instance_normalization_pallas(x3, perm3, c_tile=8))
    _check(out3, _reference_adain(x3, perm3), "c-tile")

    # --- spatial tiling path (HW=256 forced into 2 tiles of 128) -----------
    x4 = jax.random.normal(ks[6], (2, 4, 16, 16), dtype=jnp.float32)
    perm4 = jax.random.permutation(ks[7], 2)
    out4 = jax.block_until_ready(
        adaptive_instance_normalization_pallas(x4, perm4, hw_tile=128))
    _check(out4, _reference_adain(x4, perm4), "hw-tiled")

    # --- spatial tiling with a partial last block (HW=200, tile 128) -------
    x5 = jax.random.normal(ks[8], (1, 8, 10, 20), dtype=jnp.float32)
    perm5 = jax.random.permutation(ks[9], 1)
    out5 = jax.block_until_ready(
        adaptive_instance_normalization_pallas(x5, perm5, hw_tile=128))
    _check(out5, _reference_adain(x5, perm5), "hw-tiled-partial")

    print("KERNEL_OK")
</pallas_src>

<mosaic_0001>
module attributes {stable_mosaic.version = 11 : i64} {
  func.func @_stats_kernel(%arg0: i32, %arg1: i32, %arg2: i32, %arg3: memref<1x4x256xf32, #tpu.memory_space<vmem>>, %arg4: memref<1x4x1xf32, #tpu.memory_space<vmem>>, %arg5: memref<1x4x1xf32, #tpu.memory_space<vmem>>, %arg6: memref<1x4x1xf32, #tpu.memory_space<vmem>>, %arg7: memref<1x4x1xf32, #tpu.memory_space<vmem>>) attributes {dimension_semantics = [#tpu.dimension_semantics<parallel>, #tpu.dimension_semantics<parallel>, #tpu.dimension_semantics<arbitrary>], iteration_bounds = array<i64: 2, 1, 1>, scalar_prefetch = 0 : i64, scratch_operands = 2 : i64, tpu.core_type = #tpu.core_type<tc>, window_params = [{transform_indices = @transform_0, window_bounds = array<i64: 1, 4, 256>}, {transform_indices = @transform_1, window_bounds = array<i64: 1, 4, 1>}, {transform_indices = @transform_2, window_bounds = array<i64: 1, 4, 1>}]} {
    %c0 = arith.constant 0 : index
    %c0_0 = arith.constant 0 : index
    %c0_1 = arith.constant 0 : index
    %0 = vector.load %arg3[%c0, %c0_0, %c0_1] : memref<1x4x256xf32, #tpu.memory_space<vmem>>, vector<1x4x256xf32>
    %cst = arith.constant dense<0.000000e+00> : vector<1x4xf32>
    %1 = vector.multi_reduction <add>, %0, %cst [2] : vector<1x4x256xf32> to vector<1x4xf32>
    %2 = vector.shape_cast %1 : vector<1x4xf32> to vector<1x4x1xf32>
    %cst_2 = arith.constant 3.906250e-03 : f32
    %3 = vector.broadcast %cst_2 : f32 to vector<1x4x1xf32>
    %4 = arith.mulf %2, %3 : vector<1x4x1xf32>
    %5 = vector.broadcast %4 : vector<1x4x1xf32> to vector<1x4x256xf32>
    %6 = arith.subf %0, %5 : vector<1x4x256xf32>
    %7 = arith.mulf %6, %6 : vector<1x4x256xf32>
    %cst_3 = arith.constant dense<0.000000e+00> : vector<1x4xf32>
    %8 = vector.multi_reduction <add>, %7, %cst_3 [2] : vector<1x4x256xf32> to vector<1x4xf32>
    %9 = vector.shape_cast %8 : vector<1x4xf32> to vector<1x4x1xf32>
    %cst_4 = arith.constant 0.00392156886 : f32
    %10 = vector.broadcast %cst_4 : f32 to vector<1x4x1xf32>
    %11 = arith.mulf %9, %10 : vector<1x4x1xf32>
    %c0_5 = arith.constant 0 : index
    %c0_6 = arith.constant 0 : index
    %c0_7 = arith.constant 0 : index
    %12 = vector.load %arg4[%c0_5, %c0_6, %c0_7] : memref<1x4x1xf32, #tpu.memory_space<vmem>>, vector<1x4x1xf32>
    tpu.vector_store %arg4[%c0_5, %c0_6, %c0_7], %4 {strides = array<i32>} : memref<1x4x1xf32, #tpu.memory_space<vmem>>, vector<1x4x1xf32>,
    %cst_8 = arith.constant 9.99999974E-6 : f32
    %13 = vector.broadcast %cst_8 : f32 to vector<1x4x1xf32>
    %14 = arith.addf %11, %13 : vector<1x4x1xf32>
    %15 = math.sqrt %14 : vector<1x4x1xf32>
    %c0_9 = arith.constant 0 : index
    %c0_10 = arith.constant 0 : index
    %c0_11 = arith.constant 0 : index
    %16 = vector.load %arg5[%c0_9, %c0_10, %c0_11] : memref<1x4x1xf32, #tpu.memory_space<vmem>>, vector<1x4x1xf32>
    tpu.vector_store %arg5[%c0_9, %c0_10, %c0_11], %15 {strides = array<i32>} : memref<1x4x1xf32, #tpu.memory_space<vmem>>, vector<1x4x1xf32>,
    return
  }
  func.func @transform_0(%arg0: i32, %arg1: i32, %arg2: i32) -> (i32, i32, i32) {
    %c0_i32 = arith.constant 0 : i32
    return %arg0, %arg1, %arg2 : i32, i32, i32
  }
  func.func @transform_1(%arg0: i32, %arg1: i32, %arg2: i32) -> (i32, i32, i32) {
    %c0_i32 = arith.constant 0 : i32
    %c0_i32_0 = arith.constant 0 : i32
    return %arg0, %arg1, %c0_i32 : i32, i32, i32
  }
  func.func @transform_2(%arg0: i32, %arg1: i32, %arg2: i32) -> (i32, i32, i32) {
    %c0_i32 = arith.constant 0 : i32
    %c0_i32_0 = arith.constant 0 : i32
    return %arg0, %arg1, %c0_i32 : i32, i32, i32
  }
}

</mosaic_0001>

<llo_original>
// kernel: tpu_custom_call.1
$region0: #{tpu_custom_call.1}
  #allocation0 [shape = 'u32[]', space=smem, size = 0x4, offset = 0x4, fixed_abs, tag = 'smem constant byte address 0x4 - core index']
  #allocation1 [shape = 'u32[144,128]{1,0:T(1,128)}', space=vmem, size = 0x12000, scoped, tag = 'internal scratch']
  #allocation2 [shape = 'f32[1,4,1]{2,1,0:T(4,128)}', space=vmem, size = 0x800, scoped, tag = 'scratch operand']
  #allocation3 [shape = 'f32[1,4,1]{2,1,0:T(4,128)}', space=vmem, size = 0x800, scoped, tag = 'scratch operand']
  %s0 = inlined_call_operand.hbm [shape: f32[2,4,256], index: 0, kind: input, shape index: {}]
  %s1 = inlined_call_operand.vmem [shape: f32[2,4,1], index: 1, kind: output, shape index: {0}]
  %s2 = inlined_call_operand.vmem [shape: f32[2,4,1], index: 2, kind: output, shape index: {1}]
  %3 = xla_tuple %s1, %s2
  %s4 = sld [smem:[#allocation0]]
  $region49: #{tpu_custom_call.1} parent=0
    _
  %s6 = ssub.s32 1, %s4
  %s7 = scalar_select 0, %s6, %s4
  $region1: #{tpu_custom_call.1} parent=0
    #allocation4 [shape = 'u8[8192]{0}', space=vmem, size = 0x2000, scoped, tag = 'input window, operand 0']
    #allocation5 [shape = 's32[2]{0}', space=sflag, size = 0x8, scoped, tag = 'scoped memory for tpu_custom_call.1']
    %8 = vsyncpa [#allocation5], 0
    %s9 = scalar_lea.sflag [#allocation5], 1
    %10 = vsyncpa %s9, 0
    loop: start=0, step=1, limit=4
    $region2: #{tpu_custom_call.1} parent=1 // loop_pre_header
      _
    $region3: #{tpu_custom_call.1} parent=1 // loop_header
      %s12 = sphi 0, %s16
      %p13 = scmp.ge.s32.totalorder %s12, 4
      %s19 = sphi 0, %s38
      %s20 = sphi 0, %s34
      %s21 = sphi 0, %s30
      %s22 = sphi 0, %s19
      %s23 = sphi 0, %s20
      %s24 = sphi 0, %s21
      %s25 = sphi 0, %s22
      %s26 = sphi 0, %s23
      %s27 = sphi 0, %s24
      %s45 = sphi 0, %s47
      %s48 = sphi 0, %s45
      %s49 = sphi 0, %s48
      %s65 = sphi 0, %s49
      %s73 = sphi 0, %s75
      %s76 = sphi 0, %s73
      %s77 = sphi 0, %s76
      %s93 = sphi 0, %s77
      %s101 = sphi 0, %s103
      %s104 = sphi 0, %s101
      %s105 = sphi 0, %s104
      %s121 = sphi 0, %s105
    $region4: #{tpu_custom_call.1} parent=1 // loop_header_branch
      %15 = sbr.rel (%p13) target = $region8
    $region5: #{tpu_custom_call.1} parent=1 // loop_body
      %s17 = ssub.s32 %s12, 1
      %s18 = ssub.s32 %s12, 2
      %s28 = sadd.s32 1, %s21
      %p29 = scmp.ge.s32.totalorder %s28, 1
      %s30 = scalar_select %p29, 0, %s28
      %s31 = sadd.s32 1, %s20
      %s32 = scalar_select %p29, %s31, %s20
      %p33 = scmp.ge.s32.totalorder %s32, 1
      %s34 = scalar_select %p33, 0, %s32
      %s35 = sadd.s32 1, %s19
      %s36 = scalar_select %p33, %s35, %s19
      %p37 = scmp.ge.s32.totalorder %s36, 2
      %s38 = scalar_select %p37, 0, %s36
      %s39 = ssub.s32 %s19, %s38
      %s40 = ssub.s32 %s20, %s34
      %s41 = sor.u32 %s39, %s40
      %s42 = ssub.s32 %s21, %s30
      %s43 = sor.u32 %s41, %s42
      %p44 = scmp.eq.s32.totalorder %s43, 0
      %s46 = sadd.s32 %s45, 1
      %s47 = scalar_select %p44, %s45, %s46
      %p50 = pneg %p44
      %p51 = scmp.eq.s32.totalorder %s12, 1
      %p52 = por %p50, %p51
      %p53 = scmp.ne.s32.totalorder %s45, %s48
      %p54 = scmp.eq.s32.totalorder %s12, 0
      %p55 = por %p53, %p54
      %p56 = scmp.ne.s32.totalorder %s45, %s48
      %p57 = scmp.eq.s32.totalorder %s17, 1
      %p58 = por %p56, %p57
      %p59 = scmp.ne.s32.totalorder %s48, %s49
      %p60 = scmp.eq.s32.totalorder %s17, 0
      %p61 = por %p59, %p60
      %p62 = scmp.ne.s32.totalorder %s48, %s49
      %p63 = scmp.eq.s32.totalorder %s18, 1
      %p64 = por %p62, %p63
      %p66 = scmp.ne.s32.totalorder %s49, %s65
      %p67 = scmp.eq.s32.totalorder %s18, 0
      %p68 = por %p66, %p67
      %s69 = ssub.s32 %s19, %s38
      %s70 = ssub.s32 %s20, %s34
      %s71 = sor.u32 %s69, %s70
      %p72 = scmp.eq.s32.totalorder %s71, 0
      %s74 = sadd.s32 %s73, 1
      %s75 = scalar_select %p72, %s73, %s74
      %p78 = pneg %p72
      %p79 = scmp.eq.s32.totalorder %s12, 1
      %p80 = por %p78, %p79
      %p81 = scmp.ne.s32.totalorder %s73, %s76
      %p82 = scmp.eq.s32.totalorder %s12, 0
      %p83 = por %p81, %p82
      %p84 = scmp.ne.s32.totalorder %s73, %s76
      %p85 = scmp.eq.s32.totalorder %s17, 1
      %p86 = por %p84, %p85
      %p87 = scmp.ne.s32.totalorder %s76, %s77
      %p88 = scmp.eq.s32.totalorder %s17, 0
      %p89 = por %p87, %p88
      %p90 = scmp.ne.s32.totalorder %s76, %s77
      %p91 = scmp.eq.s32.totalorder %s18, 1
      %p92 = por %p90, %p91
      %p94 = scmp.ne.s32.totalorder %s77, %s93
      %p95 = scmp.eq.s32.totalorder %s18, 0
      %p96 = por %p94, %p95
      %s97 = ssub.s32 %s19, %s38
      %s98 = ssub.s32 %s20, %s34
      %s99 = sor.u32 %s97, %s98
      %p100 = scmp.eq.s32.totalorder %s99, 0
      %s102 = sadd.s32 %s101, 1
      %s103 = scalar_select %p100, %s101, %s102
      %p106 = pneg %p100
      %p107 = scmp.eq.s32.totalorder %s12, 1
      %p108 = por %p106, %p107
      %p109 = scmp.ne.s32.totalorder %s101, %s104
      %p110 = scmp.eq.s32.totalorder %s12, 0
      %p111 = por %p109, %p110
      %p112 = scmp.ne.s32.totalorder %s101, %s104
      %p113 = scmp.eq.s32.totalorder %s17, 1
      %p114 = por %p112, %p113
      %p115 = scmp.ne.s32.totalorder %s104, %s105
      %p116 = scmp.eq.s32.totalorder %s17, 0
      %p117 = por %p115, %p116
      %p118 = scmp.ne.s32.totalorder %s104, %s105
      %p119 = scmp.eq.s32.totalorder %s18, 1
      %p120 = por %p118, %p119
      %p122 = scmp.ne.s32.totalorder %s105, %s121
      %p123 = scmp.eq.s32.totalorder %s18, 0
      %p124 = por %p122, %p123
      %p125 = scmp.le.s32.totalorder 1, %s12
      %p126 = scmp.lt.s32.totalorder %s12, 3
      %p127 = pnand %p125, %p126
      %p128 = pneg %p127
      // Predicated region
      $region9: #{tpu_custom_call.1} parent=5 // pred_check
        _
      $region10: #{tpu_custom_call.1} parent=5 // pred_check_branch
        %130 = sbr.rel (%p127) target = $region12
      $region11: #{tpu_custom_call.1} parent=5 // pred_region
        %s131 = ssub.s32 %s12, 1
      $region12: #{tpu_custom_call.1} parent=5 // pred_fallthru
        _
      %p132 = scmp.lt.s32.totalorder %s12, 2
      // Predicated region
      $region13: #{tpu_custom_call.1} parent=5 // pred_check
        %p133 = pneg %p132
      $region14: #{tpu_custom_call.1} parent=5 // pred_check_branch
        %135 = sbr.rel (%p133) target = $region16
      $region15: #{tpu_custom_call.1} parent=5 // pred_region
        // Predicated region
        $region17: #{tpu_custom_call.1} parent=15 // pred_check
          %p136 = pneg %p55
        $region18: #{tpu_custom_call.1} parent=15 // pred_check_branch
          %138 = sbr.rel (%p136) target = $region20
        $region19: #{tpu_custom_call.1} parent=15 // pred_region
          %s139 = sand.u32 %s45, 1
          %s140 = scalar_lea.sflag [#allocation5], %s139
          %s141 = sand.u32 %s45, 1
          %s142 = smul.addr %s141, 8
          %s143 = scalar_lea.vmem [#allocation4], %s142
          %s144 = smul.u32 2, %s21
          %s146 = ssub.s32 128, 128
          %147 = vsyncadd %s140, %s146
          %s148 = smul.addr %s20, 2
          %s149 = sadd.s32 %s144, %s148
          %s150 = smul.addr %s19, 2
          %s151 = sadd.s32 %s149, %s150
          %s152 = smul.addr %s151, 64
          %s153 = scalar_lea.hbm %s0, %s152
          %s155 = sshll.u32 %s143, 4
          %s156 = int_to_ptr.vmem [resolvable:$true] %s155
          %158 = dma.hbm_to_vmem [thread:$0]  %s153, 128, %s156, %s140
        $region20: #{tpu_custom_call.1} parent=15 // pred_fallthru
          _
      $region16: #{tpu_custom_call.1} parent=5 // pred_fallthru
        _
      %p159 = scmp.le.s32.totalorder 1, %s12
      %p160 = scmp.lt.s32.totalorder %s12, 3
      %p161 = pnand %p159, %p160
      %p162 = pneg %p161
      // Predicated region
      $region21: #{tpu_custom_call.1} parent=5 // pred_check
        _
      $region22: #{tpu_custom_call.1} parent=5 // pred_check_branch
        %164 = sbr.rel (%p161) target = $region24
      $region23: #{tpu_custom_call.1} parent=5 // pred_region
        %s165 = ssub.s32 %s12, 1
        %s166 = sand.u32 %s48, 1
        %s167 = scalar_lea.sflag [#allocation5], %s166
        %s168 = sand.u32 %s48, 1
        %s169 = smul.addr %s168, 8
        %s170 = scalar_lea.vmem [#allocation4], %s169
        // Predicated region
        $region25: #{tpu_custom_call.1} parent=23 // pred_check
          %p171 = pneg %p61
        $region26: #{tpu_custom_call.1} parent=23 // pred_check_branch
          %173 = sbr.rel (%p171) target = $region28
        $region27: #{tpu_custom_call.1} parent=23 // pred_region
          %174 = dma.done %s167, 128
        $region28: #{tpu_custom_call.1} parent=23 // pred_fallthru
          _
        %s175 = sand.u32 %s48, 1
        %s176 = scalar_lea.sflag [#allocation5], %s175
        %s177 = sand.u32 %s48, 1
        %s178 = smul.addr %s177, 8
        %s179 = scalar_lea.vmem [#allocation4], %s178
        %p180 = pneg %p61
        %p181 = pneg %p58
        %p182 = pneg %p89
        %p183 = pneg %p86
        %p184 = scmp.lt.s32.totalorder %s22, 1
        %s185 = scalar_select %p184, %s22, 1
        %p186 = scmp.lt.s32.totalorder %s23, 0
        %s187 = scalar_select %p186, %s23, 0
        %s188 = sadd.s32 %s187, %s185
        %s189 = smul.addr %s188, 4
        %s190 = scalar_lea.vmem %s1, %s189
        %p191 = pneg %p117
        %p192 = pneg %p114
        %p193 = scmp.lt.s32.totalorder %s22, 1
        %s194 = scalar_select %p193, %s22, 1
        %p195 = scmp.lt.s32.totalorder %s23, 0
        %s196 = scalar_select %p195, %s23, 0
        %s197 = sadd.s32 %s196, %s194
        %s198 = smul.addr %s197, 4
        %s199 = scalar_lea.vmem %s2, %s198
        %s200 = smul.u32 2, %s24
        %p201 = scmp.lt.s32.totalorder %s22, 1
        %s202 = scalar_select %p201, %s22, 1
        %p203 = scmp.lt.s32.totalorder %s23, 0
        %s204 = scalar_select %p203, %s23, 0
        %s205 = sadd.s32 %s204, %s202
        %s206 = smul.addr %s205, 4
        %s207 = scalar_lea.vmem %s1, %s206
        %p208 = scmp.lt.s32.totalorder %s22, 1
        %s209 = scalar_select %p208, %s22, 1
        %p210 = scmp.lt.s32.totalorder %s23, 0
        %s211 = scalar_select %p210, %s23, 0
        %s212 = sadd.s32 %s211, %s209
        %s213 = smul.addr %s212, 4
        %s214 = scalar_lea.vmem %s2, %s213
        %v215 = vld [vmem:[%s170] sm:$0xff]
        %v217 = vcombine.high %v215, %v215
        %vm219 = vcmask 1043456
        %v220 = vsel %vm219, %v215, 0.0
        %v221 = vsel %vm219, %v217, 0.0
        %v222 = vadd.f32 %v220, %v221
        %223 = vadd.xlane.f32.xlu0 %v222
        %v224 = vpop.xlane.xlu0 %223
        %v225 = vmul.f32 %v224, 0.00390625
        %v228 = vunpack.c.l.s4 839922192
        %v229 = vunpack.c.0.s8 %v228
        %v230 = vlaneseq
        %v231 = vshrl.u32 %v230, 7
        %v232 = vsub.s32 %v229, %v231
        %v233 = vrot.slane %v225, %v232
        %v235 = vsub.f32 %v215, %v233
        %v236 = vmul.f32 %v235, %v235
        %v238 = vcombine.high %v236, %v236
        %v240 = vsel %vm219, %v236, 0.0
        %v241 = vsel %vm219, %v238, 0.0
        %v242 = vadd.f32 %v240, %v241
        %243 = vadd.xlane.f32.xlu0 %v242
        %v244 = vpop.xlane.xlu0 %243
        %v245 = vmul.f32 %v244, 0.003921569
        %vm246 = vcmask 3072
        %247 = vst.msk [vmem:[%s207] sm:$0xf] %vm246, %v225
        %v248 = vadd.f32 %v245, 1e-05
        %v249 = vrsqrt.pop %v248
        %v250 = vmul.f32 %v248, %v249
        %vm251 = vcmp.eq.f32.partialorder %v248, inf
        %v252 = vsel %vm251, %v248, %v250
        %vm253 = vcmp.eq.f32.partialorder %v248, 0.0
        %v254 = vand.u32 %v248, 2147483648
        %v255 = vsel %vm253, %v254, %v252
        %256 = vst.msk [vmem:[%s214] sm:$0xf] %vm246, %v255
        %p257 = scmp.lt.s32.totalorder %s22, 1
        %s258 = scalar_select %p257, %s22, 1
        %p259 = scmp.lt.s32.totalorder %s23, 0
        %s260 = scalar_select %p259, %s23, 0
        %s261 = sadd.s32 %s260, %s258
        %s262 = smul.addr %s261, 4
        %s263 = scalar_lea.vmem %s1, %s262
        %p264 = scmp.lt.s32.totalorder %s22, 1
        %s265 = scalar_select %p264, %s22, 1
        %p266 = scmp.lt.s32.totalorder %s23, 0
        %s267 = scalar_select %p266, %s23, 0
        %s268 = sadd.s32 %s267, %s265
        %s269 = smul.addr %s268, 4
        %s270 = scalar_lea.vmem %s2, %s269
        // Predicated region
        $region29: #{tpu_custom_call.1} parent=23 // pred_check
          %p271 = pneg %p86
        $region30: #{tpu_custom_call.1} parent=23 // pred_check_branch
          %273 = sbr.rel (%p271) target = $region32
        $region31: #{tpu_custom_call.1} parent=23 // pred_region
          _
        $region32: #{tpu_custom_call.1} parent=23 // pred_fallthru
          _
        // Predicated region
        $region33: #{tpu_custom_call.1} parent=23 // pred_check
          %p274 = pneg %p114
        $region34: #{tpu_custom_call.1} parent=23 // pred_check_branch
          %276 = sbr.rel (%p274) target = $region36
        $region35: #{tpu_custom_call.1} parent=23 // pred_region
          _
        $region36: #{tpu_custom_call.1} parent=23 // pred_fallthru
          _
      $region24: #{tpu_custom_call.1} parent=5 // pred_fallthru
        _
      %p277 = scmp.le.s32.totalorder 2, %s12
      // Predicated region
      $region37: #{tpu_custom_call.1} parent=5 // pred_check
        %p278 = pneg %p277
      $region38: #{tpu_custom_call.1} parent=5 // pred_check_branch
        %280 = sbr.rel (%p278) target = $region40
      $region39: #{tpu_custom_call.1} parent=5 // pred_region
        %s281 = ssub.s32 %s12, 2
        // Predicated region
        $region41: #{tpu_custom_call.1} parent=39 // pred_check
          %p282 = pneg %p92
        $region42: #{tpu_custom_call.1} parent=39 // pred_check_branch
          %284 = sbr.rel (%p282) target = $region44
        $region43: #{tpu_custom_call.1} parent=39 // pred_region
          %p285 = scmp.lt.s32.totalorder %s25, 1
          %s286 = scalar_select %p285, %s25, 1
          %p287 = scmp.lt.s32.totalorder %s26, 0
          %s288 = scalar_select %p287, %s26, 0
          %s289 = sadd.s32 %s288, %s286
          %s290 = smul.addr %s289, 4
          %s291 = scalar_lea.vmem %s1, %s290
        $region44: #{tpu_custom_call.1} parent=39 // pred_fallthru
          _
        // Predicated region
        $region45: #{tpu_custom_call.1} parent=39 // pred_check
          %p292 = pneg %p120
        $region46: #{tpu_custom_call.1} parent=39 // pred_check_branch
          %294 = sbr.rel (%p292) target = $region48
        $region47: #{tpu_custom_call.1} parent=39 // pred_region
          %p295 = scmp.lt.s32.totalorder %s25, 1
          %s296 = scalar_select %p295, %s25, 1
          %p297 = scmp.lt.s32.totalorder %s26, 0
          %s298 = scalar_select %p297, %s26, 0
          %s299 = sadd.s32 %s298, %s296
          %s300 = smul.addr %s299, 4
          %s301 = scalar_lea.vmem %s2, %s300
        $region48: #{tpu_custom_call.1} parent=39 // pred_fallthru
          _
      $region40: #{tpu_custom_call.1} parent=5 // pred_fallthru
        _
    $region6: #{tpu_custom_call.1} parent=1 // loop_footer
      %s16 = sadd.s32 1, %s12
    $region7: #{tpu_custom_call.1} parent=1 // loop_footer_branch
      %11 = sbr.rel target = $region3
    $region8: #{tpu_custom_call.1} parent=1 // loop_exit
      _
    %302 = vsyncpa [#allocation5], 1
    %s303 = scalar_lea.sflag [#allocation5], 1
    %304 = vsyncpa %s303, 1

</llo_original>
